<compile_context>
chip_gen: v6e
topology: v6e:2x2x1
jax: 0.10.0
libtpu: 0.0.40
codegen_flags: <defaults>
</compile_context>

<pallas_src>
import functools
import math

import jax
import jax.numpy as jnp
from jax import lax
from jax.experimental import pallas as pl
from jax.experimental.pallas import tpu as pltpu


_INV_SQRT2 = 1.0 / math.sqrt(2.0)


def _gelu_exact(x):
    # PyTorch nn.GELU() default: 0.5 * x * (1 + erf(x / sqrt(2)))
    return 0.5 * x * (1.0 + lax.erf(x * _INV_SQRT2))


def _round_up(v, m):
    return (v + m - 1) // m * m


def _maybe_pad(a, pads):
    if all(lo == 0 and hi == 0 for lo, hi in pads):
        return a
    return jnp.pad(a, pads)


def mlp_kernel(x_ref, w1_ref, b1_ref, w2_ref, b2_ref, o_ref, acc_ref, h_ref,
               *, use_gelu=True):
    # Grid: (rows i, out-cols j, mid-reduction k). Reduction axis k innermost.
    j = pl.program_id(1)
    k = pl.program_id(2)
    tk = w2_ref.shape[0]

    @pl.when(k == 0)
    def _init():
        acc_ref[...] = jnp.zeros_like(acc_ref)

    col = pl.multiple_of(k * tk, tk)

    # GEMM1 reduces over the FULL in_size (untiled) so bias + GELU see a fully
    # reduced h tile. Compute it only on the first output-column tile and cache
    # it in VMEM; later j steps reuse the cache (no recompute, no W1 re-read).
    @pl.when(j == 0)
    def _compute_h():
        h = jnp.dot(x_ref[...], w1_ref[...], preferred_element_type=jnp.float32)
        h = h + b1_ref[...].astype(jnp.float32)
        if use_gelu:
            h = _gelu_exact(h)
        h_ref[:, pl.ds(col, tk)] = h.astype(h_ref.dtype)

    h_tile = h_ref[:, pl.ds(col, tk)]
    acc_ref[...] += jnp.dot(h_tile, w2_ref[...], preferred_element_type=jnp.float32)

    @pl.when(k == pl.num_programs(2) - 1)
    def _finalize():
        y = acc_ref[...] + b2_ref[...].astype(jnp.float32)
        o_ref[...] = y.astype(o_ref.dtype)


def mlp_pallas(x, w1, b1, w2, b2, *, use_gelu=True,
               tile_m=256, tile_n=512, tile_k=512):
    """x: [..., in_size] -> [..., out_size].  w1: [in, mid], w2: [mid, out]."""
    in_size = x.shape[-1]
    mid_size = w1.shape[1]
    out_size = w2.shape[1]
    lead = x.shape[:-1]

    x2d = x.reshape(-1, in_size)
    m = x2d.shape[0]

    x_isz = x2d.dtype.itemsize
    w_isz = w1.dtype.itemsize

    # dtype-aware row granularity (bf16 packs 2 rows / sublane, int8/fp8 pack 4)
    row_mult = {4: 8, 2: 16, 1: 32}.get(x_isz, 8)

    in_pad = _round_up(in_size, 128)

    # ---- generation-aware VMEM budget ----
    try:
        vmem_cap = int(pltpu.get_tpu_info().vmem_capacity_bytes)
    except Exception:
        vmem_cap = 64 << 20  # conservative fallback (v7x-sized)
    vmem_limit = int(min(vmem_cap - (4 << 20), 100 << 20))
    budget = vmem_limit - (6 << 20)  # headroom for compiler-internal scratch

    # ---- initial tile choice ----
    tm = _round_up(min(tile_m, _round_up(m, row_mult)), row_mult)
    tk = min(tile_k, _round_up(mid_size, 128))
    tn = min(tile_n, _round_up(out_size, 128))

    def vmem_need(tm_, tk_, tn_):
        mid_pad_ = _round_up(mid_size, tk_)
        dbl = 2 * (tm_ * in_pad * x_isz                    # x tile
                   + in_pad * tk_ * w_isz + tk_ * w_isz    # W1 tile + b1 tile
                   + tk_ * tn_ * w_isz + tn_ * w_isz       # W2 tile + b2 tile
                   + tm_ * tn_ * x_isz)                    # out tile
        scratch = tm_ * tn_ * 4 + tm_ * mid_pad_ * w_isz   # acc + h_cache
        return dbl + scratch

    # Shrink tiles (never the VMEM limit) until the working set fits.
    while vmem_need(tm, tk, tn) > budget:
        if tk > 128:
            tk = max(128, 128 * ((tk // 2) // 128))
        elif tn > 128:
            tn = max(128, 128 * ((tn // 2) // 128))
        elif tm > row_mult:
            tm = max(row_mult, row_mult * ((tm // 2) // row_mult))
        else:
            break  # TODO(synk): also tile in_size for extremely large in_size.

    m_pad = _round_up(m, tm)
    mid_pad = _round_up(mid_size, tk)
    out_pad = _round_up(out_size, tn)

    # ---- pad only when needed (lane-dense layouts, no OOB blocks) ----
    x_p = _maybe_pad(x2d, ((0, m_pad - m), (0, in_pad - in_size)))
    w1_p = _maybe_pad(w1, ((0, in_pad - in_size), (0, mid_pad - mid_size)))
    b1_p = _maybe_pad(b1, ((0, mid_pad - mid_size),)).reshape(1, mid_pad)
    w2_p = _maybe_pad(w2, ((0, mid_pad - mid_size), (0, out_pad - out_size)))
    b2_p = _maybe_pad(b2, ((0, out_pad - out_size),)).reshape(1, out_pad)

    nk = mid_pad // tk
    grid = (m_pad // tm, out_pad // tn, nk)

    # W1/b1 block index frozen for j > 0: the pipeline sees an unchanged block
    # index and skips the HBM re-fetch (cached h is used instead of GEMM1).
    def w1_map(i, j, k):
        return (0, jnp.where(j == 0, k, nk - 1))

    def b1_map(i, j, k):
        return (0, jnp.where(j == 0, k, nk - 1))

    # ---- scheduler hint (ideal, post-cache counts; per-array dtypes) ----
    cost = pl.CostEstimate(
        flops=2 * m * (in_size * mid_size + mid_size * out_size),
        transcendentals=m * mid_size if use_gelu else 0,
        bytes_accessed=(x2d.size * x_isz
                        + w1.size * w1.dtype.itemsize + b1.size * b1.dtype.itemsize
                        + w2.size * w2.dtype.itemsize + b2.size * b2.dtype.itemsize
                        + m * out_size * x_isz),
    )

    out_p = pl.pallas_call(
        functools.partial(mlp_kernel, use_gelu=use_gelu),
        out_shape=jax.ShapeDtypeStruct((m_pad, out_pad), x2d.dtype),
        grid_spec=pltpu.PrefetchScalarGridSpec(
            num_scalar_prefetch=0,
            grid=grid,
            in_specs=[
                pl.BlockSpec((tm, in_pad), lambda i, j, k: (i, 0)),   # x rows
                pl.BlockSpec((in_pad, tk), w1_map),                   # W1 col tile
                pl.BlockSpec((1, tk), b1_map),                        # b1 tile
                pl.BlockSpec((tk, tn), lambda i, j, k: (k, j)),       # W2 tile
                pl.BlockSpec((1, tn), lambda i, j, k: (0, j)),        # b2 tile
            ],
            out_specs=pl.BlockSpec((tm, tn), lambda i, j, k: (i, j)),
            scratch_shapes=[
                pltpu.VMEM((tm, tn), jnp.float32),      # f32 accumulator
                pltpu.VMEM((tm, mid_pad), w2_p.dtype),  # persistent h cache
            ],
        ),
        compiler_params=pltpu.CompilerParams(
            # j must be "arbitrary": the h-cache written at j == 0 is reused by
            # later j steps (unsafe to shard j across v7x's two TensorCores).
            dimension_semantics=("parallel", "arbitrary", "arbitrary"),
            vmem_limit_bytes=vmem_limit,
        ),
        cost_estimate=cost,
    )(x_p, w1_p, b1_p, w2_p, b2_p)

    return out_p[:m, :out_size].reshape(*lead, out_size)


def init_linear_params(key, in_features, out_features, dtype=jnp.float32):
    # Deterministic init matching nn.Linear's uniform(-1/sqrt(in), 1/sqrt(in)).
    kw, kb = jax.random.split(key)
    bound = 1.0 / math.sqrt(in_features)
    # Stored as [in, out] = PyTorch weight.T (so the kernel does x @ W).
    w = jax.random.uniform(kw, (in_features, out_features),
                           minval=-bound, maxval=bound, dtype=dtype)
    b = jax.random.uniform(kb, (out_features,),
                           minval=-bound, maxval=bound, dtype=dtype)
    return w, b


def mlp_reference(x, w1, b1, w2, b2, use_gelu=True):
    h = jnp.dot(x, w1, preferred_element_type=jnp.float32) + b1
    if use_gelu:
        h = _gelu_exact(h)
    return (jnp.dot(h.astype(w2.dtype), w2, preferred_element_type=jnp.float32)
            + b2).astype(x.dtype)


def _run_case(key, batch, seq, in_size, mid_size, out_size, atol, use_gelu=True):
    k_x, k_l1, k_l2 = jax.random.split(key, 3)
    x = jax.random.normal(k_x, (batch, seq, in_size), dtype=jnp.float32)
    w1, b1 = init_linear_params(k_l1, in_size, mid_size)
    w2, b2 = init_linear_params(k_l2, mid_size, out_size)

    out = jax.block_until_ready(mlp_pallas(x, w1, b1, w2, b2, use_gelu=use_gelu))
    ref = mlp_reference(x, w1, b1, w2, b2, use_gelu=use_gelu)

    assert out.shape == (batch, seq, out_size)
    assert jnp.allclose(out, ref, atol=atol, rtol=atol), (
        f"mismatch vs reference (max |diff| = {jnp.max(jnp.abs(out - ref))})")


if __name__ == "__main__":
    key = jax.random.PRNGKey(0)
    k_a, k_b, k_c = jax.random.split(key, 3)

    # Lane-aligned case (128-multiple feature dims -> unmasked stores).
    _run_case(k_a, batch=2, seq=8, in_size=128, mid_size=256, out_size=128, atol=2e-3)

    # Unaligned case exercising the padding path (rows and features padded).
    _run_case(k_b, batch=2, seq=7, in_size=56, mid_size=100, out_size=72, atol=2e-3)

    # Multi-tile case exercising the h-cache reuse across output-column tiles j.
    _run_case(k_c, batch=2, seq=192, in_size=128, mid_size=1024, out_size=1536,
              atol=2e-3)

    print("KERNEL_OK")
</pallas_src>

<mosaic_0001>
module attributes {stable_mosaic.version = 11 : i64} {
  func.func @mlp_kernel(%arg0: i32, %arg1: i32, %arg2: i32, %arg3: memref<16x128xf32, #tpu.memory_space<vmem>>, %arg4: memref<128x256xf32, #tpu.memory_space<vmem>>, %arg5: memref<1x256xf32, #tpu.memory_space<vmem>>, %arg6: memref<256x128xf32, #tpu.memory_space<vmem>>, %arg7: memref<1x128xf32, #tpu.memory_space<vmem>>, %arg8: memref<16x128xf32, #tpu.memory_space<vmem>>, %arg9: memref<16x128xf32, #tpu.memory_space<vmem>>, %arg10: memref<16x256xf32, #tpu.memory_space<vmem>>) attributes {dimension_semantics = [#tpu.dimension_semantics<parallel>, #tpu.dimension_semantics<arbitrary>, #tpu.dimension_semantics<arbitrary>], iteration_bounds = array<i64: 1, 1, 1>, scalar_prefetch = 0 : i64, scratch_operands = 2 : i64, tpu.core_type = #tpu.core_type<tc>, window_params = [{transform_indices = @transform_0, window_bounds = array<i64: 16, 128>}, {transform_indices = @transform_1, window_bounds = array<i64: 128, 256>}, {transform_indices = @transform_2, window_bounds = array<i64: 1, 256>}, {transform_indices = @transform_3, window_bounds = array<i64: 256, 128>}, {transform_indices = @transform_4, window_bounds = array<i64: 1, 128>}, {transform_indices = @transform_5, window_bounds = array<i64: 16, 128>}]} {
    %c0_i32 = arith.constant 0 : i32
    %0 = arith.cmpi eq, %arg2, %c0_i32 : i32
    %1 = arith.extui %0 : i1 to i32
    %c0_i32_0 = arith.constant 0 : i32
    %2 = arith.cmpi ne, %1, %c0_i32_0 : i32
    scf.if %2 {
      %cst_11 = arith.constant 0.000000e+00 : f32
      %18 = vector.broadcast %cst_11 : f32 to vector<16x128xf32>
      %c0_12 = arith.constant 0 : index
      %c0_13 = arith.constant 0 : index
      %19 = vector.load %arg9[%c0_12, %c0_13] : memref<16x128xf32, #tpu.memory_space<vmem>>, vector<16x128xf32>
      tpu.vector_store %arg9[%c0_12, %c0_13], %18 {strides = array<i32>} : memref<16x128xf32, #tpu.memory_space<vmem>>, vector<16x128xf32>,
    } else {
    }
    %c256_i32 = arith.constant 256 : i32
    %3 = arith.muli %arg2, %c256_i32 : i32
    %4 = tpu.assume_multiple %3, 256 : i32
    %c0_i32_1 = arith.constant 0 : i32
    %5 = arith.cmpi eq, %arg1, %c0_i32_1 : i32
    %6 = arith.extui %5 : i1 to i32
    %c0_i32_2 = arith.constant 0 : i32
    %7 = arith.cmpi ne, %6, %c0_i32_2 : i32
    scf.if %7 {
      %c0_11 = arith.constant 0 : index
      %c0_12 = arith.constant 0 : index
      %18 = vector.load %arg3[%c0_11, %c0_12] : memref<16x128xf32, #tpu.memory_space<vmem>>, vector<16x128xf32>
      %c0_13 = arith.constant 0 : index
      %c0_14 = arith.constant 0 : index
      %19 = vector.load %arg4[%c0_13, %c0_14] : memref<128x256xf32, #tpu.memory_space<vmem>>, vector<128x256xf32>
      %cst_15 = arith.constant dense<0.000000e+00> : vector<16x256xf32>
      %20 = tpu.matmul %18, %19, %cst_15 {dimension_numbers = #tpu.dot_dimension_numbers<[1], [0], [0], [1], [0, 0, 1, 1], [], []>} : vector<16x128xf32>, vector<128x256xf32>, vector<16x256xf32> -> vector<16x256xf32>
      %c0_16 = arith.constant 0 : index
      %c0_17 = arith.constant 0 : index
      %21 = vector.load %arg5[%c0_16, %c0_17] : memref<1x256xf32, #tpu.memory_space<vmem>>, vector<1x256xf32>
      %22 = vector.broadcast %21 : vector<1x256xf32> to vector<16x256xf32>
      %23 = arith.addf %20, %22 : vector<16x256xf32>
      %cst_18 = arith.constant 5.000000e-01 : f32
      %24 = vector.broadcast %cst_18 : f32 to vector<16x256xf32>
      %25 = arith.mulf %24, %23 : vector<16x256xf32>
      %cst_19 = arith.constant 0.707106769 : f32
      %26 = vector.broadcast %cst_19 : f32 to vector<16x256xf32>
      %27 = arith.mulf %23, %26 : vector<16x256xf32>
      %28 = math.erf %27 : vector<16x256xf32>
      %cst_20 = arith.constant 1.000000e+00 : f32
      %29 = vector.broadcast %cst_20 : f32 to vector<16x256xf32>
      %30 = arith.addf %29, %28 : vector<16x256xf32>
      %31 = arith.mulf %25, %30 : vector<16x256xf32>
      %c0_21 = arith.constant 0 : index
      %32 = arith.index_cast %4 : i32 to index
      %33 = vector.load %arg10[%c0_21, %32] : memref<16x256xf32, #tpu.memory_space<vmem>>, vector<16x256xf32>
      tpu.vector_store %arg10[%c0_21, %32], %31 {strides = array<i32>} : memref<16x256xf32, #tpu.memory_space<vmem>>, vector<16x256xf32>,
    } else {
    }
    %c0 = arith.constant 0 : index
    %8 = arith.index_cast %4 : i32 to index
    %9 = vector.load %arg10[%c0, %8] : memref<16x256xf32, #tpu.memory_space<vmem>>, vector<16x256xf32>
    %c0_3 = arith.constant 0 : index
    %c0_4 = arith.constant 0 : index
    %10 = vector.load %arg9[%c0_3, %c0_4] : memref<16x128xf32, #tpu.memory_space<vmem>>, vector<16x128xf32>
    %c0_5 = arith.constant 0 : index
    %c0_6 = arith.constant 0 : index
    %11 = vector.load %arg6[%c0_5, %c0_6] : memref<256x128xf32, #tpu.memory_space<vmem>>, vector<256x128xf32>
    %cst = arith.constant dense<0.000000e+00> : vector<16x128xf32>
    %12 = tpu.matmul %9, %11, %cst {dimension_numbers = #tpu.dot_dimension_numbers<[1], [0], [0], [1], [0, 0, 1, 1], [], []>} : vector<16x256xf32>, vector<256x128xf32>, vector<16x128xf32> -> vector<16x128xf32>
    %13 = arith.addf %10, %12 : vector<16x128xf32>
    %c0_7 = arith.constant 0 : index
    %c0_8 = arith.constant 0 : index
    %14 = vector.load %arg9[%c0_7, %c0_8] : memref<16x128xf32, #tpu.memory_space<vmem>>, vector<16x128xf32>
    tpu.vector_store %arg9[%c0_7, %c0_8], %13 {strides = array<i32>} : memref<16x128xf32, #tpu.memory_space<vmem>>, vector<16x128xf32>,
    %c0_i32_9 = arith.constant 0 : i32
    %15 = arith.cmpi eq, %arg2, %c0_i32_9 : i32
    %16 = arith.extui %15 : i1 to i32
    %c0_i32_10 = arith.constant 0 : i32
    %17 = arith.cmpi ne, %16, %c0_i32_10 : i32
    scf.if %17 {
      %c0_11 = arith.constant 0 : index
      %c0_12 = arith.constant 0 : index
      %18 = vector.load %arg9[%c0_11, %c0_12] : memref<16x128xf32, #tpu.memory_space<vmem>>, vector<16x128xf32>
      %c0_13 = arith.constant 0 : index
      %c0_14 = arith.constant 0 : index
      %19 = vector.load %arg7[%c0_13, %c0_14] : memref<1x128xf32, #tpu.memory_space<vmem>>, vector<1x128xf32>
      %20 = vector.broadcast %19 : vector<1x128xf32> to vector<16x128xf32>
      %21 = arith.addf %18, %20 : vector<16x128xf32>
      %c0_15 = arith.constant 0 : index
      %c0_16 = arith.constant 0 : index
      %22 = vector.load %arg8[%c0_15, %c0_16] : memref<16x128xf32, #tpu.memory_space<vmem>>, vector<16x128xf32>
      tpu.vector_store %arg8[%c0_15, %c0_16], %21 {strides = array<i32>} : memref<16x128xf32, #tpu.memory_space<vmem>>, vector<16x128xf32>,
    } else {
    }
    return
  }
  func.func @transform_0(%arg0: i32, %arg1: i32, %arg2: i32) -> (i32, i32) {
    %c0_i32 = arith.constant 0 : i32
    %c0_i32_0 = arith.constant 0 : i32
    return %arg0, %c0_i32 : i32, i32
  }
  func.func @transform_1(%arg0: i32, %arg1: i32, %arg2: i32) -> (i32, i32) {
    %c0_i32 = arith.constant 0 : i32
    %0 = arith.cmpi eq, %arg1, %c0_i32 : i32
    %c0_i32_0 = arith.constant 0 : i32
    %1 = arith.select %0, %arg2, %c0_i32_0 : i32
    %c0_i32_1 = arith.constant 0 : i32
    %c0_i32_2 = arith.constant 0 : i32
    return %c0_i32_1, %1 : i32, i32
  }
  func.func @transform_2(%arg0: i32, %arg1: i32, %arg2: i32) -> (i32, i32) {
    %c0_i32 = arith.constant 0 : i32
    %0 = arith.cmpi eq, %arg1, %c0_i32 : i32
    %c0_i32_0 = arith.constant 0 : i32
    %1 = arith.select %0, %arg2, %c0_i32_0 : i32
    %c0_i32_1 = arith.constant 0 : i32
    %c0_i32_2 = arith.constant 0 : i32
    return %c0_i32_1, %1 : i32, i32
  }
  func.func @transform_3(%arg0: i32, %arg1: i32, %arg2: i32) -> (i32, i32) {
    %c0_i32 = arith.constant 0 : i32
    return %arg2, %arg1 : i32, i32
  }
  func.func @transform_4(%arg0: i32, %arg1: i32, %arg2: i32) -> (i32, i32) {
    %c0_i32 = arith.constant 0 : i32
    %c0_i32_0 = arith.constant 0 : i32
    return %c0_i32, %arg1 : i32, i32
  }
  func.func @transform_5(%arg0: i32, %arg1: i32, %arg2: i32) -> (i32, i32) {
    %c0_i32 = arith.constant 0 : i32
    return %arg0, %arg1 : i32, i32
  }
}

</mosaic_0001>

<llo_original>
// kernel: tpu_custom_call.1
$region0: #{tpu_custom_call.1}
  #allocation0 [shape = 'u32[]', space=smem, size = 0x4, offset = 0x4, fixed_abs, tag = 'smem constant byte address 0x4 - core index']
  #allocation1 [shape = 'u32[144,128]{1,0:T(1,128)}', space=vmem, size = 0x12000, scoped, tag = 'internal scratch']
  #allocation2 [shape = 'f32[16,128]{1,0:T(8,128)}', space=vmem, size = 0x2000, scoped, tag = 'scratch operand']
  #allocation3 [shape = 'f32[16,256]{1,0:T(8,128)}', space=vmem, size = 0x4000, scoped, tag = 'scratch operand']
  %s0 = inlined_call_operand.hbm [shape: f32[16,128], index: 0, kind: input, shape index: {}]
  %s1 = inlined_call_operand.hbm [shape: f32[128,256], index: 1, kind: input, shape index: {}]
  %s2 = inlined_call_operand.vmem [shape: f32[1,256], index: 2, kind: input, shape index: {}]
  %s3 = inlined_call_operand.hbm [shape: f32[256,128], index: 3, kind: input, shape index: {}]
  %s4 = inlined_call_operand.vmem [shape: f32[1,128], index: 4, kind: input, shape index: {}]
  %s5 = inlined_call_operand.hbm [shape: f32[16,128], index: 5, kind: output, shape index: {}]
  %s6 = sld [smem:[#allocation0]]
  $region54: #{tpu_custom_call.1} parent=0
    _
  %s8 = ssub.s32 1, %s6
  %s9 = scalar_select 0, %s8, %s6
  $region1: #{tpu_custom_call.1} parent=0
    #allocation4 [shape = 'u8[8192]{0}', space=vmem, size = 0x2000, scoped, tag = 'input window, operand 0, single buffered']
    #allocation5 [shape = 's32[1]{0}', space=sflag, size = 0x4, scoped, tag = 'scoped memory for tpu_custom_call.1']
    #allocation6 [shape = 's32[1]{0}', space=sflag, size = 0x4, scoped, tag = 'scoped memory for tpu_custom_call.1']
    #allocation7 [shape = 'u8[131072]{0}', space=vmem, size = 0x20000, scoped, tag = 'input window, operand 1, single buffered']
    #allocation8 [shape = 's32[1]{0}', space=sflag, size = 0x4, scoped, tag = 'scoped memory for tpu_custom_call.1']
    #allocation9 [shape = 'u8[131072]{0}', space=vmem, size = 0x20000, scoped, tag = 'input window, operand 3, single buffered']
    #allocation10 [shape = 'u8[8192]{0}', space=vmem, size = 0x2000, scoped, tag = 'output window, operand 0, single buffered']
    %10 = vsyncpa [#allocation5], 0
    %11 = vsyncpa [#allocation8], 0
    %12 = vsyncpa [#allocation6], 0
    // Predicated region
    $region2: #{tpu_custom_call.1} parent=1 // pred_check
      _
    $region3: #{tpu_custom_call.1} parent=1 // pred_check_branch
      %14 = sbr.rel (0) target = $region5
    $region4: #{tpu_custom_call.1} parent=1 // pred_region
      %s16 = ssub.s32 256, 256
      %17 = vsyncadd [#allocation5], %s16
      %s18 = sshll.u32 [#allocation4], 4
      %s19 = int_to_ptr.vmem [resolvable:$true] %s18
      %24 = dma.hbm_to_vmem [thread:$0]  %s0, 256, %s19, [#allocation5], 128, 128, 8
    $region5: #{tpu_custom_call.1} parent=1 // pred_fallthru
      _
    // Predicated region
    $region6: #{tpu_custom_call.1} parent=1 // pred_check
      _
    $region7: #{tpu_custom_call.1} parent=1 // pred_check_branch
      %26 = sbr.rel (0) target = $region9
    $region8: #{tpu_custom_call.1} parent=1 // pred_region
      %p27 = scmp.eq.s32.totalorder 0, 0
      %s28 = scalar_select %p27, 0, 0
      %s29 = smul.u32 2, %s28
      %s31 = ssub.s32 4096, 4096
      %32 = vsyncadd [#allocation8], %s31
      %s33 = smul.addr %s29, 128
      %s34 = scalar_lea.hbm %s1, %s33
      %s35 = sshll.u32 [#allocation7], 4
      %s36 = int_to_ptr.vmem [resolvable:$true] %s35
      %41 = dma.hbm_to_vmem [thread:$0]  %s34, 4096, %s36, [#allocation8], 256, 256, 16
    $region9: #{tpu_custom_call.1} parent=1 // pred_fallthru
      _
    // Predicated region
    $region10: #{tpu_custom_call.1} parent=1 // pred_check
      _
    $region11: #{tpu_custom_call.1} parent=1 // pred_check_branch
      %43 = sbr.rel (0) target = $region13
    $region12: #{tpu_custom_call.1} parent=1 // pred_region
      %p44 = scmp.eq.s32.totalorder 0, 0
      %s45 = scalar_select %p44, 0, 0
      %s46 = smul.u32 2, %s45
      %p47 = scmp.lt.s32.totalorder %s46, 1
      %s48 = scalar_select %p47, %s46, 1
      %s49 = scalar_lea.vmem %s2, %s48
      %p50 = scmp.eq.s32.totalorder 0, 0
      %s51 = scalar_select %p50, 0, 0
      %s52 = smul.u32 2, %s51
    $region13: #{tpu_custom_call.1} parent=1 // pred_fallthru
      _
    // Predicated region
    $region14: #{tpu_custom_call.1} parent=1 // pred_check
      _
    $region15: #{tpu_custom_call.1} parent=1 // pred_check_branch
      %54 = sbr.rel (0) target = $region17
    $region16: #{tpu_custom_call.1} parent=1 // pred_region
      %s56 = ssub.s32 4096, 4096
      %57 = vsyncadd [#allocation8], %s56
      %s58 = sshll.u32 [#allocation9], 4
      %s59 = int_to_ptr.vmem [resolvable:$true] %s58
      %64 = dma.hbm_to_vmem [thread:$0]  %s3, 4096, %s59, [#allocation8], 128, 128, 8
    $region17: #{tpu_custom_call.1} parent=1 // pred_fallthru
      _
    // Predicated region
    $region18: #{tpu_custom_call.1} parent=1 // pred_check
      _
    $region19: #{tpu_custom_call.1} parent=1 // pred_check_branch
      %66 = sbr.rel (0) target = $region21
    $region20: #{tpu_custom_call.1} parent=1 // pred_region
      _
    $region21: #{tpu_custom_call.1} parent=1 // pred_fallthru
      _
    // Predicated region
    $region22: #{tpu_custom_call.1} parent=1 // pred_check
      _
    $region23: #{tpu_custom_call.1} parent=1 // pred_check_branch
      %68 = sbr.rel (0) target = $region25
    $region24: #{tpu_custom_call.1} parent=1 // pred_region
      %69 = dma.done [#allocation5], 256
    $region25: #{tpu_custom_call.1} parent=1 // pred_fallthru
      _
    // Predicated region
    $region26: #{tpu_custom_call.1} parent=1 // pred_check
      _
    $region27: #{tpu_custom_call.1} parent=1 // pred_check_branch
      %71 = sbr.rel (0) target = $region29
    $region28: #{tpu_custom_call.1} parent=1 // pred_region
      %72 = dma.done [#allocation8], 4096
    $region29: #{tpu_custom_call.1} parent=1 // pred_fallthru
      _
    // Predicated region
    $region30: #{tpu_custom_call.1} parent=1 // pred_check
      _
    $region31: #{tpu_custom_call.1} parent=1 // pred_check_branch
      %74 = sbr.rel (0) target = $region33
    $region32: #{tpu_custom_call.1} parent=1 // pred_region
      %75 = dma.done [#allocation8], 4096
    $region33: #{tpu_custom_call.1} parent=1 // pred_fallthru
      _
    %p76 = scmp.eq.s32.totalorder 0, 0
    %s77 = scalar_select %p76, 0, 0
    %s78 = smul.u32 2, %s77
    %p79 = scmp.lt.s32.totalorder %s78, 1
    %s80 = scalar_select %p79, %s78, 1
    %s81 = scalar_lea.vmem %s2, %s80
    %p82 = scmp.eq.s32.totalorder 0, 0
    %s83 = scalar_select %p82, 0, 0
    %s84 = smul.u32 2, %s83
    %p85 = scmp.eq.s32.totalorder 0, 0
    %s86 = scalar_select %p85, 0, 0
    %s87 = smul.u32 2, %s86
    %p88 = scmp.lt.s32.totalorder %s87, 1
    %s89 = scalar_select %p88, %s87, 1
    %s90 = scalar_lea.vmem %s2, %s89
    %p91 = scmp.eq.s32.totalorder 0, 0
    %s92 = scalar_select %p91, 0, 0
    %s93 = smul.u32 2, %s92
    %p94 = scmp.eq.s32.totalorder 0, 0
    // Predicated region
    $region34: #{tpu_custom_call.1} parent=1 // pred_check
      %p95 = pneg %p94
    $region35: #{tpu_custom_call.1} parent=1 // pred_check_branch
      %97 = sbr.rel (%p95) target = $region37
    $region36: #{tpu_custom_call.1} parent=1 // pred_region
      %98 = vst [vmem:[#allocation2] sm:$0xff] 0.0
      %99 = vst [vmem:[#allocation2 + $0x8] sm:$0xff] 0.0
    $region37: #{tpu_custom_call.1} parent=1 // pred_fallthru
      _
    %s100 = smul.u32 0, 256
    %p101 = scmp.eq.s32.totalorder 0, 0
    // Predicated region
    $region38: #{tpu_custom_call.1} parent=1 // pred_check
      %p102 = pneg %p101
    $region39: #{tpu_custom_call.1} parent=1 // pred_check_branch
      %104 = sbr.rel (%p102) target = $region41
    $region40: #{tpu_custom_call.1} parent=1 // pred_region
      %v105 = vld [vmem:[#allocation4] sm:$0xff]
      %v106 = vld [vmem:[#allocation4 + $0x8] sm:$0xff]
      %v107 = vld [vmem:[#allocation7] sm:$0xff]
      %v108 = vld [vmem:[#allocation7 + $0x8] sm:$0xff]
      %v109 = vld [vmem:[#allocation7 + $0x10] sm:$0xff]
      %v110 = vld [vmem:[#allocation7 + $0x18] sm:$0xff]
      %v111 = vld [vmem:[#allocation7 + $0x20] sm:$0xff]
      %v112 = vld [vmem:[#allocation7 + $0x28] sm:$0xff]
      %v113 = vld [vmem:[#allocation7 + $0x30] sm:$0xff]
      %v114 = vld [vmem:[#allocation7 + $0x38] sm:$0xff]
      %v115 = vld [vmem:[#allocation7 + $0x40] sm:$0xff]
      %v116 = vld [vmem:[#allocation7 + $0x48] sm:$0xff]
      %v117 = vld [vmem:[#allocation7 + $0x50] sm:$0xff]
      %v118 = vld [vmem:[#allocation7 + $0x58] sm:$0xff]
      %v119 = vld [vmem:[#allocation7 + $0x60] sm:$0xff]
      %v120 = vld [vmem:[#allocation7 + $0x68] sm:$0xff]
      %v121 = vld [vmem:[#allocation7 + $0x70] sm:$0xff]
      %v122 = vld [vmem:[#allocation7 + $0x78] sm:$0xff]
      %v123 = vld [vmem:[#allocation7 + $0x80] sm:$0xff]
      %v124 = vld [vmem:[#allocation7 + $0x88] sm:$0xff]
      %v125 = vld [vmem:[#allocation7 + $0x90] sm:$0xff]
      %v126 = vld [vmem:[#allocation7 + $0x98] sm:$0xff]
      %v127 = vld [vmem:[#allocation7 + $0xa0] sm:$0xff]
      %v128 = vld [vmem:[#allocation7 + $0xa8] sm:$0xff]
      %v129 = vld [vmem:[#allocation7 + $0xb0] sm:$0xff]
      %v130 = vld [vmem:[#allocation7 + $0xb8] sm:$0xff]
      %v131 = vld [vmem:[#allocation7 + $0xc0] sm:$0xff]
      %v132 = vld [vmem:[#allocation7 + $0xc8] sm:$0xff]
      %v133 = vld [vmem:[#allocation7 + $0xd0] sm:$0xff]
      %v134 = vld [vmem:[#allocation7 + $0xd8] sm:$0xff]
      %v135 = vld [vmem:[#allocation7 + $0xe0] sm:$0xff]
      %v136 = vld [vmem:[#allocation7 + $0xe8] sm:$0xff]
      %v137 = vld [vmem:[#allocation7 + $0xf0] sm:$0xff]
      %v138 = vld [vmem:[#allocation7 + $0xf8] sm:$0xff]
      %v139 = vld [vmem:[%s90] sm:$0x3]
      %v141 = vlaneseq
      %v142 = vshrl.u32 %v141, 7
      %v143 = vsub.s32 0, %v142
      %v144 = vrot.slane %v139, %v143
      %v145 = vlaneseq
      %v146 = vshrl.u32 %v145, 7
      %v147 = vsub.s32 1, %v146
      %v148 = vrot.slane %v139, %v147
      %151 = vmatprep.subr.mxu0 %v138
      %152 = vmatpush1.msra.mxu0 %v137
      %153 = vmatprep.subr.mxu0 %v136
      %154 = vmatpush1.msra.mxu0 %v135
      %155 = vmatprep.subr.mxu0 %v134
      %156 = vmatpush1.msra.mxu0 %v133
      %157 = vmatprep.subr.mxu0 %v132
      %158 = vmatpush1.msra.mxu0 %v131
      %159 = vmatprep.subr.mxu0 %v130
      %160 = vmatpush1.msra.mxu0 %v129
      %161 = vmatprep.subr.mxu0 %v128
      %162 = vmatpush1.msra.mxu0 %v127
      %163 = vmatprep.subr.mxu0 %v126
      %164 = vmatpush1.msra.mxu0 %v125
      %165 = vmatprep.subr.mxu0 %v124
      %166 = vmatpush1.msra.mxu0 %v123
      %167 = vmatprep.subr.mxu0 %v122
      %168 = vmatpush1.msra.mxu0 %v121
      %169 = vmatprep.subr.mxu0 %v120
      %170 = vmatpush1.msra.mxu0 %v119
      %171 = vmatprep.subr.mxu0 %v118
      %172 = vmatpush1.msra.mxu0 %v117
      %173 = vmatprep.subr.mxu0 %v116
      %174 = vmatpush1.msra.mxu0 %v115
      %175 = vmatprep.subr.mxu0 %v114
      %176 = vmatpush1.msra.mxu0 %v113
      %177 = vmatprep.subr.mxu0 %v112
      %178 = vmatpush1.msra.mxu0 %v111
      %179 = vmatprep.subr.mxu0 %v110
      %180 = vmatpush1.msra.mxu0 %v109
      %181 = vmatprep.subr.mxu0 %v108
      %182 = vmatpush1.msra.mxu0 %v107
      %183 = vmatprep.subr.mxu0 0.0
      %184 = vmatpush2.msra.mxu0 0.0
      %185 = vmatprep.subr.mxu0 0.0
      %186 = vmatpush2.msra.mxu0 0.0
      %187 = vmatprep.subr.mxu0 0.0
      %188 = vmatpush2.msra.mxu0 0.0
      %189 = vmatprep.subr.mxu0 0.0
      %190 = vmatpush2.msra.mxu0 0.0
      %191 = vmatprep.subr.mxu0 0.0
      %192 = vmatpush2.msra.mxu0 0.0
      %193 = vmatprep.subr.mxu0 0.0
      %194 = vmatpush2.msra.mxu0 0.0
      %195 = vmatprep.subr.mxu0 0.0
      %196 = vmatpush2.msra.mxu0 0.0
      %197 = vmatprep.subr.mxu0 0.0
      %198 = vmatpush2.msra.mxu0 0.0
      %199 = vmatprep.subr.mxu0 0.0
      %200 = vmatpush2.msra.mxu0 0.0
      %201 = vmatprep.subr.mxu0 0.0
      %202 = vmatpush2.msra.mxu0 0.0
      %203 = vmatprep.subr.mxu0 0.0
      %204 = vmatpush2.msra.mxu0 0.0
      %205 = vmatprep.subr.mxu0 0.0
      %206 = vmatpush2.msra.mxu0 0.0
      %207 = vmatprep.subr.mxu0 0.0
      %208 = vmatpush2.msra.mxu0 0.0
      %209 = vmatprep.subr.mxu0 0.0
      %210 = vmatpush2.msra.mxu0 0.0
      %211 = vmatprep.subr.mxu0 0.0
      %212 = vmatpush2.msra.mxu0 0.0
      %213 = vmatprep.subr.mxu0 0.0
      %214 = vmatpush2.msra.mxu0 0.0
      %215 = vmatprep.mubr.f32.mxu0 0.0
      %216 = vmatmul.mubr.f32.gmra.mxu0 %v105
      %v217 = vpop.f32.mrf.mxu0
      %v218 = vadd.f32 %v144, %v217
      %v219 = vpop.f32.mrf.mxu0
      %v220 = vadd.f32 %v148, %v219
      %221 = vmatprep.mubr.f32.mxu0 0.0
      %222 = vmatmul.mubr.f32.gmra.mxu0 %v106
      %v223 = vpop.f32.mrf.mxu0
      %v224 = vadd.f32 %v144, %v223
      %v225 = vpop.f32.mrf.mxu0
      %v226 = vadd.f32 %v148, %v225
      %227 = vdwg.mxu0
      %v228 = vmul.f32 %v218, 0.5
      %v229 = vmul.f32 %v220, 0.5
      %v230 = vmul.f32 %v224, 0.5
      %v231 = vmul.f32 %v226, 0.5
      %v232 = vmul.f32 %v218, 0.70710677
      %v233 = vmul.f32 %v220, 0.70710677
      %v234 = vmul.f32 %v224, 0.70710677
      %v235 = vmul.f32 %v226, 0.70710677
      %v236 = verf.f32.pop %v232
      %v237 = verf.f32.pop %v233
      %v238 = verf.f32.pop %v234
      %v239 = verf.f32.pop %v235
      %v240 = vadd.f32 %v236, 1.0
      %v241 = vadd.f32 %v237, 1.0
      %v242 = vadd.f32 %v238, 1.0
      %v243 = vadd.f32 %v239, 1.0
      %v244 = vmul.f32 %v228, %v240
      %v245 = vmul.f32 %v229, %v241
      %v246 = vmul.f32 %v230, %v242
      %v247 = vmul.f32 %v231, %v243
      %s248 = sshra.s32 %s100, 7
      %s249 = sand.u32 %s100, 127
      %s250 = smul.addr %s248, 8
      %s251 = scalar_lea.vmem [#allocation3], %s250
      %252 = vst [vmem:[%s251] sm:$0xff] %v244
      %253 = vst [vmem:[%s251 + $0x8] sm:$0xff] %v245
      %254 = vst [vmem:[%s251 + $0x10] sm:$0xff] %v246
      %255 = vst [vmem:[%s251 + $0x18] sm:$0xff] %v247
    $region41: #{tpu_custom_call.1} parent=1 // pred_fallthru
      _
    %s256 = sshra.s32 %s100, 7
    %s257 = sand.u32 %s100, 127
    %s258 = smul.addr %s256, 8
    %s259 = scalar_lea.vmem [#allocation3], %s258
    %v260 = vld [vmem:[%s259] sm:$0xff]
    %v261 = vld [vmem:[%s259 + $0x8] sm:$0xff]
    %v262 = vld [vmem:[%s259 + $0x10] sm:$0xff]
    %v263 = vld [vmem:[%s259 + $0x18] sm:$0xff]
    %v264 = vld [vmem:[#allocation2] sm:$0xff]
    %v265 = vld [vmem:[#allocation2 + $0x8] sm:$0xff]
    %v266 = vld [vmem:[#allocation9] sm:$0xff]
    %v267 = vld [vmem:[#allocation9 + $0x8] sm:$0xff]
    %v268 = vld [vmem:[#allocation9 + $0x10] sm:$0xff]
    %v269 = vld [vmem:[#allocation9 + $0x18] sm:$0xff]
    %v270 = vld [vmem:[#allocation9 + $0x20] sm:$0xff]
    %v271 = vld [vmem:[#allocation9 + $0x28] sm:$0xff]
    %v272 = vld [vmem:[#allocation9 + $0x30] sm:$0xff]
    %v273 = vld [vmem:[#allocation9 + $0x38] sm:$0xff]
    %v274 = vld [vmem:[#allocation9 + $0x40] sm:$0xff]
    %v275 = vld [vmem:[#allocation9 + $0x48] sm:$0xff]
    %v276 = vld [vmem:[#allocation9 + $0x50] sm:$0xff]
    %v277 = vld [vmem:[#allocation9 + $0x58] sm:$0xff]
    %v278 = vld [vmem:[#allocation9 + $0x60] sm:$0xff]
    %v279 = vld [vmem:[#allocation9 + $0x68] sm:$0xff]
    %v280 = vld [vmem:[#allocation9 + $0x70] sm:$0xff]
    %v281 = vld [vmem:[#allocation9 + $0x78] sm:$0xff]
    %v282 = vld [vmem:[#allocation9 + $0x80] sm:$0xff]
    %v283 = vld [vmem:[#allocation9 + $0x88] sm:$0xff]
    %v284 = vld [vmem:[#allocation9 + $0x90] sm:$0xff]
    %v285 = vld [vmem:[#allocation9 + $0x98] sm:$0xff]
    %v286 = vld [vmem:[#allocation9 + $0xa0] sm:$0xff]
    %v287 = vld [vmem:[#allocation9 + $0xa8] sm:$0xff]
    %v288 = vld [vmem:[#allocation9 + $0xb0] sm:$0xff]
    %v289 = vld [vmem:[#allocation9 + $0xb8] sm:$0xff]
    %v290 = vld [vmem:[#allocation9 + $0xc0] sm:$0xff]
    %v291 = vld [vmem:[#allocation9 + $0xc8] sm:$0xff]
    %v292 = vld [vmem:[#allocation9 + $0xd0] sm:$0xff]
    %v293 = vld [vmem:[#allocation9 + $0xd8] sm:$0xff]
    %v294 = vld [vmem:[#allocation9 + $0xe0] sm:$0xff]
    %v295 = vld [vmem:[#allocation9 + $0xe8] sm:$0xff]
    %v296 = vld [vmem:[#allocation9 + $0xf0] sm:$0xff]
    %v297 = vld [vmem:[#allocation9 + $0xf8] sm:$0xff]
    %298 = vmatprep.subr.mxu0 0.0
    %299 = vmatpush1.msra.mxu0 %v281
    %300 = vmatprep.subr.mxu0 0.0
    %301 = vmatpush1.msra.mxu0 %v280
    %302 = vmatprep.subr.mxu0 0.0
    %303 = vmatpush1.msra.mxu0 %v279
    %304 = vmatprep.subr.mxu0 0.0
    %305 = vmatpush1.msra.mxu0 %v278
    %306 = vmatprep.subr.mxu0 0.0
    %307 = vmatpush1.msra.mxu0 %v277
    %308 = vmatprep.subr.mxu0 0.0
    %309 = vmatpush1.msra.mxu0 %v276
    %310 = vmatprep.subr.mxu0 0.0
    %311 = vmatpush1.msra.mxu0 %v275
    %312 = vmatprep.subr.mxu0 0.0
    %313 = vmatpush1.msra.mxu0 %v274
    %314 = vmatprep.subr.mxu0 0.0
    %315 = vmatpush1.msra.mxu0 %v273
    %316 = vmatprep.subr.mxu0 0.0
    %317 = vmatpush1.msra.mxu0 %v272
    %318 = vmatprep.subr.mxu0 0.0
    %319 = vmatpush1.msra.mxu0 %v271
    %320 = vmatprep.subr.mxu0 0.0
    %321 = vmatpush1.msra.mxu0 %v270
    %322 = vmatprep.subr.mxu0 0.0
    %323 = vmatpush1.msra.mxu0 %v269
    %324 = vmatprep.subr.mxu0 0.0
    %325 = vmatpush1.msra.mxu0 %v268
    %326 = vmatprep.subr.mxu0 0.0
    %327 = vmatpush1.msra.mxu0 %v267
    %328 = vmatprep.subr.mxu0 0.0
    %329 = vmatpush1.msra.mxu0 %v266
    %330 = vmatprep.subr.mxu0 0.0
    %331 = vmatpush2.msra.mxu0 %v297
    %332 = vmatprep.subr.mxu0 0.0
    %333 = vmatpush2.msra.mxu0 %v296
    %334 = vmatprep.subr.mxu0 0.0
    %335 = vmatpush2.msra.mxu0 %v295
    %336 = vmatprep.subr.mxu0 0.0
    %337 = vmatpush2.msra.mxu0 %v294
    %338 = vmatprep.subr.mxu0 0.0
    %339 = vmatpush2.msra.mxu0 %v293
    %340 = vmatprep.subr.mxu0 0.0
    %341 = vmatpush2.msra.mxu0 %v292
    %342 = vmatprep.subr.mxu0 0.0
    %343 = vmatpush2.msra.mxu0 %v291
    %344 = vmatprep.subr.mxu0 0.0
    %345 = vmatpush2.msra.mxu0 %v290
    %346 = vmatprep.subr.mxu0 0.0
    %347 = vmatpush2.msra.mxu0 %v289
    %348 = vmatprep.subr.mxu0 0.0
    %349 = vmatpush2.msra.mxu0 %v288
    %350 = vmatprep.subr.mxu0 0.0
    %351 = vmatpush2.msra.mxu0 %v287
    %352 = vmatprep.subr.mxu0 0.0
    %353 = vmatpush2.msra.mxu0 %v286
    %354 = vmatprep.subr.mxu0 0.0
    %355 = vmatpush2.msra.mxu0 %v285
    %356 = vmatprep.subr.mxu0 0.0
    %357 = vmatpush2.msra.mxu0 %v284
    %358 = vmatprep.subr.mxu0 0.0
    %359 = vmatpush2.msra.mxu0 %v283
    %360 = vmatprep.subr.mxu0 0.0
    %361 = vmatpush2.msra.mxu0 %v282
    %362 = vmatprep.mubr.f32.mxu0 %v261
    %363 = vmatmul.mubr.f32.gmra.mxu0 %v260
    %v364 = vpop.f32.mrf.mxu0
    %v365 = vadd.f32 0.0, %v364
    %v366 = vpop.f32.mrf.mxu0
    %367 = vmatprep.mubr.f32.mxu0 %v263
    %368 = vmatmul.mubr.f32.gmra.mxu0 %v262
    %v369 = vpop.f32.mrf.mxu0
    %v370 = vadd.f32 0.0, %v369
    %v371 = vpop.f32.mrf.mxu0
    %372 = vdwg.mxu0
    %v373 = vadd.f32 %v264, %v365
    %v374 = vadd.f32 %v265, %v370
    %375 = vst [vmem:[#allocation2] sm:$0xff] %v373
    %376 = vst [vmem:[#allocation2 + $0x8] sm:$0xff] %v374
    // Predicated region
    $region42: #{tpu_custom_call.1} parent=1 // pred_check
      %p377 = pneg %p94
    $region43: #{tpu_custom_call.1} parent=1 // pred_check_branch
      %379 = sbr.rel (%p377) target = $region45
    $region44: #{tpu_custom_call.1} parent=1 // pred_region
      %v380 = vld [vmem:[#allocation2] sm:$0xff]
      %v381 = vld [vmem:[#allocation2 + $0x8] sm:$0xff]
      %v382 = vld [vmem:[%s4] sm:$0x1]
      %v384 = vlaneseq
      %v385 = vshrl.u32 %v384, 7
      %v386 = vsub.s32 0, %v385
      %v387 = vrot.slane %v382, %v386
      %v389 = vadd.f32 %v380, %v387
      %v390 = vadd.f32 %v381, %v387
      %391 = vst [vmem:[#allocation10] sm:$0xff] %v389
      %392 = vst [vmem:[#allocation10 + $0x8] sm:$0xff] %v390
    $region45: #{tpu_custom_call.1} parent=1 // pred_fallthru
      _
    // Predicated region
    $region46: #{tpu_custom_call.1} parent=1 // pred_check
      _
    $region47: #{tpu_custom_call.1} parent=1 // pred_check_branch
      %394 = sbr.rel (0) target = $region49
    $region48: #{tpu_custom_call.1} parent=1 // pred_region
      %s396 = ssub.s32 256, 256
      %397 = vsyncadd [#allocation6], %s396
      %s398 = sshll.u32 [#allocation10], 4
      %s399 = int_to_ptr.vmem [resolvable:$true] %s398
      %404 = dma.vmem_to_hbm [thread:$0]  %s399, 256, %s5, [#allocation6], 128, 128, 8
    $region49: #{tpu_custom_call.1} parent=1 // pred_fallthru
      _
    // Predicated region
    $region50: #{tpu_custom_call.1} parent=1 // pred_check
      _
    $region51: #{tpu_custom_call.1} parent=1 // pred_check_branch
      %406 = sbr.rel (0) target = $region53
    $region52: #{tpu_custom_call.1} parent=1 // pred_region
      %407 = dma.done [#allocation6], 256
    $region53: #{tpu_custom_call.1} parent=1 // pred_fallthru
      _
    %408 = vsyncpa [#allocation5], 1
    %409 = vsyncpa [#allocation8], 1
    %410 = vsyncpa [#allocation6], 1

</llo_original>
